<compile_context>
chip_gen: v5e
topology: v5e:2x2
jax: 0.10.0
libtpu: 0.0.40
codegen_flags: <defaults>
</compile_context>

<pallas_src>
import functools

import jax
import jax.numpy as jnp
from jax.experimental import pallas as pl
from jax.experimental.pallas import tpu as pltpu

_BF16_SUBLANE = 16   # bf16 packs 2 rows per sublane -> keep batch tiles 16-row aligned


def _round_up(x, m):
    return ((x + m - 1) // m) * m


# --------------------------------------------------------------------------
# Kernel: two MXU matmuls (trunk, fused actor|critic heads), biases as VPU
# broadcast adds, f32 accumulation throughout.
# --------------------------------------------------------------------------
def actor_critic_kernel(state_ref, w1_ref, b1_ref, wh_ref, bh_ref, out_ref):
    # f32 -> bf16 cast rides in spare VPU slots under the DMA/MXU critical path.
    s = state_ref[...].astype(w1_ref.dtype)
    # Common trunk: Linear (+bias) + ReLU; f32 accumulation, f32 hidden.
    h = jnp.dot(s, w1_ref[...], preferred_element_type=jnp.float32)
    h = jnp.maximum(h + b1_ref[...], 0.0)
    # Fused heads (f32): columns [0:A] = actor logits, column A = value.
    out = jnp.dot(h, wh_ref[...], preferred_element_type=jnp.float32)
    out_ref[...] = (out + bh_ref[...]).astype(out_ref.dtype)


# --------------------------------------------------------------------------
# Host-side param packing (done once, outside the hot path).
# --------------------------------------------------------------------------
def pack_params(params):
    """Pack (w1,b1,wa,ba,wc,bc) into (w1 bf16, b1 f32, wh f32, bh f32)."""
    w1, b1, wa, ba, wc, bc = params
    w1p = w1.astype(jnp.bfloat16)                       # (state_dim, hidden)
    b1p = b1.reshape(1, -1).astype(jnp.float32)         # (1, hidden)
    whp = jnp.concatenate([wa, wc], axis=1).astype(jnp.float32)  # (hidden, A+1)
    bhp = jnp.concatenate(
        [ba.reshape(1, -1), bc.reshape(1, -1)], axis=1).astype(jnp.float32)
    return w1p, b1p, whp, bhp


# --------------------------------------------------------------------------
# Fused forward: returns (actor_logits [B, A], value [B, 1]).
# --------------------------------------------------------------------------
@jax.jit
def actor_critic_forward(state, w1p, b1p, whp, bhp):
    B, state_dim = state.shape
    hidden = w1p.shape[1]
    n_out = whp.shape[1]           # action_dim + 1
    action_dim = n_out - 1

    # Batch tile: >=2 grid steps for mid/large B (keeps both v7x TensorCores
    # busy under "parallel"), up to 1024 rows per step for rollout batches,
    # always a multiple of 16 so bf16 tiles stay packed-native.
    tb = min(1024, _round_up(max(1, -(-B // 2)), _BF16_SUBLANE))
    b_pad = _round_up(B, tb)
    if b_pad != B:
        # Row-only pad (no lane padding, no cast) so the grid divides evenly.
        state = jnp.pad(state, ((0, b_pad - B), (0, 0)))

    out = pl.pallas_call(
        actor_critic_kernel,
        out_shape=jax.ShapeDtypeStruct((b_pad, n_out), jnp.float32),
        grid=(b_pad // tb,),
        in_specs=[
            pl.BlockSpec((tb, state_dim), lambda i: (i, 0)),      # streamed state (f32)
            pl.BlockSpec((state_dim, hidden), lambda i: (0, 0)),  # resident trunk W (bf16)
            pl.BlockSpec((1, hidden), lambda i: (0, 0)),          # trunk bias (f32)
            pl.BlockSpec((hidden, n_out), lambda i: (0, 0)),      # fused heads W (f32)
            pl.BlockSpec((1, n_out), lambda i: (0, 0)),           # fused heads bias (f32)
        ],
        out_specs=pl.BlockSpec((tb, n_out), lambda i: (i, 0)),
        compiler_params=pltpu.CompilerParams(
            dimension_semantics=("parallel",)),
    )(state, w1p, b1p, whp, bhp)

    # Single slice of the already-narrow output, then split actor / value.
    av = out[:B]
    return av[:, :action_dim], av[:, action_dim:]


# API parity with the PyTorch module (same fused kernel, just pick a head).
def actor_only(state, w1p, b1p, whp, bhp):
    return actor_critic_forward(state, w1p, b1p, whp, bhp)[0]


def critic_only(state, w1p, b1p, whp, bhp):
    return actor_critic_forward(state, w1p, b1p, whp, bhp)[1]


# --------------------------------------------------------------------------
# Deterministic synthetic parameters (PyTorch-Linear-like uniform init).
# --------------------------------------------------------------------------
def init_params(key, state_dim, hidden_dim, action_dim):
    ks = jax.random.split(key, 6)

    def lin(kw, kb, fan_in, fan_out):
        bound = 1.0 / jnp.sqrt(fan_in)
        w = jax.random.uniform(kw, (fan_in, fan_out), jnp.float32, -bound, bound)
        b = jax.random.uniform(kb, (1, fan_out), jnp.float32, -bound, bound)
        return w, b

    w1, b1 = lin(ks[0], ks[1], state_dim, hidden_dim)    # common trunk
    wa, ba = lin(ks[2], ks[3], hidden_dim, action_dim)   # actor head
    wc, bc = lin(ks[4], ks[5], hidden_dim, 1)            # critic head
    return w1, b1, wa, ba, wc, bc


def _reference(state, params):
    w1, b1, wa, ba, wc, bc = params
    x = jnp.maximum(state @ w1 + b1, 0.0)
    return x @ wa + ba, x @ wc + bc


if __name__ == "__main__":
    state_dim = 16
    hidden_dim = 32
    action_dim = 8

    key = jax.random.PRNGKey(0)
    k_state, k_state2, k_params = jax.random.split(key, 3)

    params = init_params(k_params, state_dim, hidden_dim, action_dim)
    packed = pack_params(params)  # (w1 bf16, b1 f32, wh f32, bh f32)

    # Small acting-path batch (grid = 1).
    batch = 4
    state = jax.random.normal(k_state, (batch, state_dim), jnp.float32)
    actor_out, value_out = actor_critic_forward(state, *packed)
    jax.block_until_ready((actor_out, value_out))

    actor_ref, value_ref = _reference(state, params)
    assert actor_out.shape == (batch, action_dim)
    assert value_out.shape == (batch, 1)
    # Only the trunk matmul runs in bf16 -> modest tolerance vs f32 reference.
    assert jnp.allclose(actor_out, actor_ref, atol=3e-2, rtol=3e-2)
    assert jnp.allclose(value_out, value_ref, atol=3e-2, rtol=3e-2)

    # Mid-size batch: exercises grid >= 2 (both TCs on v7x) and row padding.
    batch2 = 40
    state2 = jax.random.normal(k_state2, (batch2, state_dim), jnp.float32)
    actor2, value2 = actor_critic_forward(state2, *packed)
    jax.block_until_ready((actor2, value2))

    actor2_ref, value2_ref = _reference(state2, params)
    assert actor2.shape == (batch2, action_dim)
    assert value2.shape == (batch2, 1)
    assert jnp.allclose(actor2, actor2_ref, atol=3e-2, rtol=3e-2)
    assert jnp.allclose(value2, value2_ref, atol=3e-2, rtol=3e-2)

    print("KERNEL_OK")
</pallas_src>

<mosaic_0001>
module attributes {stable_mosaic.version = 11 : i64} {
  func.func @actor_critic_kernel(%arg0: i32, %arg1: memref<16x16xf32, #tpu.memory_space<vmem>>, %arg2: memref<16x32xbf16, #tpu.memory_space<vmem>>, %arg3: memref<1x32xf32, #tpu.memory_space<vmem>>, %arg4: memref<32x9xf32, #tpu.memory_space<vmem>>, %arg5: memref<1x9xf32, #tpu.memory_space<vmem>>, %arg6: memref<16x9xf32, #tpu.memory_space<vmem>>) attributes {dimension_semantics = [#tpu.dimension_semantics<parallel>], iteration_bounds = array<i64: 1>, scalar_prefetch = 0 : i64, scratch_operands = 0 : i64, tpu.core_type = #tpu.core_type<tc>, window_params = [{transform_indices = @transform_0, window_bounds = array<i64: 16, 16>}, {pipeline_mode = #tpu.pipeline_mode<synchronous>, transform_indices = @transform_1, window_bounds = array<i64: 16, 32>}, {pipeline_mode = #tpu.pipeline_mode<synchronous>, transform_indices = @transform_2, window_bounds = array<i64: 1, 32>}, {pipeline_mode = #tpu.pipeline_mode<synchronous>, transform_indices = @transform_3, window_bounds = array<i64: 32, 9>}, {pipeline_mode = #tpu.pipeline_mode<synchronous>, transform_indices = @transform_4, window_bounds = array<i64: 1, 9>}, {transform_indices = @transform_5, window_bounds = array<i64: 16, 9>}]} {
    %c0 = arith.constant 0 : index
    %c0_0 = arith.constant 0 : index
    %0 = vector.load %arg1[%c0, %c0_0] : memref<16x16xf32, #tpu.memory_space<vmem>>, vector<16x16xf32>
    %1 = arith.truncf %0 : vector<16x16xf32> to vector<16x16xbf16>
    %c0_1 = arith.constant 0 : index
    %c0_2 = arith.constant 0 : index
    %2 = vector.load %arg2[%c0_1, %c0_2] : memref<16x32xbf16, #tpu.memory_space<vmem>>, vector<16x32xbf16>
    %cst = arith.constant dense<0.000000e+00> : vector<16x32xf32>
    %3 = tpu.matmul %1, %2, %cst {dimension_numbers = #tpu.dot_dimension_numbers<[1], [0], [0], [1], [0, 0, 1, 1], [], []>} : vector<16x16xbf16>, vector<16x32xbf16>, vector<16x32xf32> -> vector<16x32xf32>
    %c0_3 = arith.constant 0 : index
    %c0_4 = arith.constant 0 : index
    %4 = vector.load %arg3[%c0_3, %c0_4] : memref<1x32xf32, #tpu.memory_space<vmem>>, vector<1x32xf32>
    %5 = vector.broadcast %4 : vector<1x32xf32> to vector<16x32xf32>
    %6 = arith.addf %3, %5 : vector<16x32xf32>
    %cst_5 = arith.constant 0.000000e+00 : f32
    %7 = vector.broadcast %cst_5 : f32 to vector<16x32xf32>
    %8 = arith.maximumf %6, %7 : vector<16x32xf32>
    %c0_6 = arith.constant 0 : index
    %c0_7 = arith.constant 0 : index
    %9 = vector.load %arg4[%c0_6, %c0_7] : memref<32x9xf32, #tpu.memory_space<vmem>>, vector<32x9xf32>
    %cst_8 = arith.constant dense<0.000000e+00> : vector<16x9xf32>
    %10 = tpu.matmul %8, %9, %cst_8 {dimension_numbers = #tpu.dot_dimension_numbers<[1], [0], [0], [1], [0, 0, 1, 1], [], []>} : vector<16x32xf32>, vector<32x9xf32>, vector<16x9xf32> -> vector<16x9xf32>
    %c0_9 = arith.constant 0 : index
    %c0_10 = arith.constant 0 : index
    %11 = vector.load %arg5[%c0_9, %c0_10] : memref<1x9xf32, #tpu.memory_space<vmem>>, vector<1x9xf32>
    %12 = vector.broadcast %11 : vector<1x9xf32> to vector<16x9xf32>
    %13 = arith.addf %10, %12 : vector<16x9xf32>
    %c0_11 = arith.constant 0 : index
    %c0_12 = arith.constant 0 : index
    %14 = vector.load %arg6[%c0_11, %c0_12] : memref<16x9xf32, #tpu.memory_space<vmem>>, vector<16x9xf32>
    tpu.vector_store %arg6[%c0_11, %c0_12], %13 {strides = array<i32>} : memref<16x9xf32, #tpu.memory_space<vmem>>, vector<16x9xf32>,
    return
  }
  func.func @transform_0(%arg0: i32) -> (i32, i32) {
    %c0_i32 = arith.constant 0 : i32
    %c0_i32_0 = arith.constant 0 : i32
    return %arg0, %c0_i32 : i32, i32
  }
  func.func @transform_1(%arg0: i32) -> (i32, i32) {
    %c0_i32 = arith.constant 0 : i32
    %c0_i32_0 = arith.constant 0 : i32
    %c0_i32_1 = arith.constant 0 : i32
    return %c0_i32, %c0_i32_0 : i32, i32
  }
  func.func @transform_2(%arg0: i32) -> (i32, i32) {
    %c0_i32 = arith.constant 0 : i32
    %c0_i32_0 = arith.constant 0 : i32
    %c0_i32_1 = arith.constant 0 : i32
    return %c0_i32, %c0_i32_0 : i32, i32
  }
  func.func @transform_3(%arg0: i32) -> (i32, i32) {
    %c0_i32 = arith.constant 0 : i32
    %c0_i32_0 = arith.constant 0 : i32
    %c0_i32_1 = arith.constant 0 : i32
    return %c0_i32, %c0_i32_0 : i32, i32
  }
  func.func @transform_4(%arg0: i32) -> (i32, i32) {
    %c0_i32 = arith.constant 0 : i32
    %c0_i32_0 = arith.constant 0 : i32
    %c0_i32_1 = arith.constant 0 : i32
    return %c0_i32, %c0_i32_0 : i32, i32
  }
  func.func @transform_5(%arg0: i32) -> (i32, i32) {
    %c0_i32 = arith.constant 0 : i32
    %c0_i32_0 = arith.constant 0 : i32
    return %arg0, %c0_i32 : i32, i32
  }
}

</mosaic_0001>

<llo_original>
// kernel: actor_critic_forward.1
$region0: #{actor_critic_forward.1}
  #allocation0 [shape = 'u32[]', space=smem, size = 0x4, offset = 0x4, fixed_abs, tag = 'smem constant byte address 0x4 - core index']
  #allocation1 [shape = 'u32[72,128]{1,0:T(1,128)}', space=vmem, size = 0x9000, scoped, tag = 'internal scratch']
  %s0 = inlined_call_operand.vmem [shape: f32[16,16], index: 0, kind: input, shape index: {}]
  %s1 = inlined_call_operand.vmem [shape: bf16[16,32], index: 1, kind: input, shape index: {}]
  %s2 = inlined_call_operand.vmem [shape: f32[1,32], index: 2, kind: input, shape index: {}]
  %s3 = inlined_call_operand.vmem [shape: f32[32,9], index: 3, kind: input, shape index: {}]
  %s4 = inlined_call_operand.vmem [shape: f32[1,9], index: 4, kind: input, shape index: {}]
  %s5 = inlined_call_operand.vmem [shape: f32[16,9], index: 5, kind: output, shape index: {}]
  %s6 = sld [smem:[#allocation0]]
  $region30: #{actor_critic_forward.1} parent=0
    _
  %s8 = ssub.s32 1, %s6
  %s9 = scalar_select 0, %s8, %s6
  // Predicated region
  $region2: #{actor_critic_forward.1} parent=0 // pred_check
    _
  $region3: #{actor_critic_forward.1} parent=0 // pred_check_branch
    %11 = sbr.rel (0) target = $region5
  $region4: #{actor_critic_forward.1} parent=0 // pred_region
    _
  $region5: #{actor_critic_forward.1} parent=0 // pred_fallthru
    _
  // Predicated region
  $region6: #{actor_critic_forward.1} parent=0 // pred_check
    _
  $region7: #{actor_critic_forward.1} parent=0 // pred_check_branch
    %13 = sbr.rel (0) target = $region9
  $region8: #{actor_critic_forward.1} parent=0 // pred_region
    _
  $region9: #{actor_critic_forward.1} parent=0 // pred_fallthru
    _
  // Predicated region
  $region10: #{actor_critic_forward.1} parent=0 // pred_check
    _
  $region11: #{actor_critic_forward.1} parent=0 // pred_check_branch
    %15 = sbr.rel (0) target = $region13
  $region12: #{actor_critic_forward.1} parent=0 // pred_region
    _
  $region13: #{actor_critic_forward.1} parent=0 // pred_fallthru
    _
  // Predicated region
  $region14: #{actor_critic_forward.1} parent=0 // pred_check
    _
  $region15: #{actor_critic_forward.1} parent=0 // pred_check_branch
    %17 = sbr.rel (0) target = $region17
  $region16: #{actor_critic_forward.1} parent=0 // pred_region
    _
  $region17: #{actor_critic_forward.1} parent=0 // pred_fallthru
    _
  // Predicated region
  $region18: #{actor_critic_forward.1} parent=0 // pred_check
    _
  $region19: #{actor_critic_forward.1} parent=0 // pred_check_branch
    %19 = sbr.rel (0) target = $region21
  $region20: #{actor_critic_forward.1} parent=0 // pred_region
    _
  $region21: #{actor_critic_forward.1} parent=0 // pred_fallthru
    _
  %v21 = vld [vmem:[%s0] sm:$0xff]
  %v22 = vld [vmem:[%s0 + $0x8] sm:$0xff]
  %v23 = vpack.c.bf16 %v22, %v21
  %v24 = vld [vmem:[%s1] sm:$0xf]
  %v25 = vld [vmem:[%s1 + $0x4] sm:$0xf]
  %v26 = vld [vmem:[%s2] sm:$0x1]
  %v28 = vperm.slane %v26, 0
  %v32 = vunpack.c.l.b16 %v24
  %v33 = vunpack.c.l.b16 %v25
  %v34 = vpack.c.b16 %v33, %v32
  %vm36 = vcmask 130048
  %v38 = vsel %vm36, %v23, 0
  %40 = vmatpush.bf16.msra.mxu0 0
  %41 = vmatpush.bf16.msra.mxu0 0
  %42 = vmatpush.bf16.msra.mxu0 0
  %43 = vmatpush.bf16.msra.mxu0 0
  %44 = vmatpush.bf16.msra.mxu0 0
  %45 = vmatpush.bf16.msra.mxu0 0
  %46 = vmatpush.bf16.msra.mxu0 0
  %47 = vmatpush.bf16.msra.mxu0 %v34
  %48 = vmatmul.bf16.gmra.mxu0 %v38
  %v49 = vpop.f32.mrf.mxu0
  %v50 = vadd.f32 %v28, %v49
  %v51 = vpop.f32.mrf.mxu0
  %v52 = vadd.f32 %v28, %v51
  %53 = vdwg.mxu0
  %v54 = vmax.f32 %v50, 0.0
  %v55 = vmax.f32 %v52, 0.0
  %v56 = vld [vmem:[%s3] sm:$0xff]
  %v57 = vld [vmem:[%s3 + $0x8] sm:$0xff]
  %v58 = vld [vmem:[%s3 + $0x10] sm:$0xff]
  %v59 = vld [vmem:[%s3 + $0x18] sm:$0xff]
  %v60 = vld [vmem:[%s4] sm:$0x1]
  %v62 = vperm.slane %v60, 0
  %vm64 = vcmask 261120
  %v66 = vsel %vm64, %v54, 0
  %v69 = vsel %vm64, %v55, 0
  %71 = vmatpush.msra.mxu0 0.0
  %72 = vmatpush.msra.mxu0 0.0
  %73 = vmatpush.msra.mxu0 0.0
  %74 = vmatpush.msra.mxu0 0.0
  %75 = vmatpush.msra.mxu0 0.0
  %76 = vmatpush.msra.mxu0 0.0
  %77 = vmatpush.msra.mxu0 0.0
  %78 = vmatpush.msra.mxu0 0.0
  %79 = vmatpush.msra.mxu0 0.0
  %80 = vmatpush.msra.mxu0 0.0
  %81 = vmatpush.msra.mxu0 0.0
  %82 = vmatpush.msra.mxu0 0.0
  %83 = vmatpush.msra.mxu0 %v59
  %84 = vmatpush.msra.mxu0 %v58
  %85 = vmatpush.msra.mxu0 %v57
  %86 = vmatpush.msra.mxu0 %v56
  %87 = vmatmul.f32.gmra.mxu0 %v66
  %v88 = vpop.f32.mrf.mxu0
  %v89 = vadd.f32 %v62, %v88
  %90 = vmatmul.f32.gmra.mxu0 %v69
  %v91 = vpop.f32.mrf.mxu0
  %v92 = vadd.f32 %v62, %v91
  %93 = vdwg.mxu0
  %vm94 = vcmask 72704
  %95 = vst.msk [vmem:[%s5] sm:$0xff] %vm94, %v89
  %96 = vst.msk [vmem:[%s5 + $0x8] sm:$0xff] %vm94, %v92
  // Predicated region
  $region22: #{actor_critic_forward.1} parent=0 // pred_check
    _
  $region23: #{actor_critic_forward.1} parent=0 // pred_check_branch
    %98 = sbr.rel (0) target = $region25
  $region24: #{actor_critic_forward.1} parent=0 // pred_region
    _
  $region25: #{actor_critic_forward.1} parent=0 // pred_fallthru
    _
  // Predicated region
  $region26: #{actor_critic_forward.1} parent=0 // pred_check
    _
  $region27: #{actor_critic_forward.1} parent=0 // pred_check_branch
    %100 = sbr.rel (0) target = $region29
  $region28: #{actor_critic_forward.1} parent=0 // pred_region
    _
  $region29: #{actor_critic_forward.1} parent=0 // pred_fallthru
    _

</llo_original>
